<compile_context>
chip_gen: v5e
topology: v5e:2x2
jax: 0.10.0
libtpu: 0.0.40
codegen_flags: <defaults>
</compile_context>

<pallas_src>
import jax
import jax.numpy as jnp
from jax.experimental import pallas as pl
from jax.experimental.pallas import tpu as pltpu

IN_FEATURES = 3
OUT_FEATURES = 1
LANES = 128            # TPU lane width (last dim of the batch slab)
SUBLANES = 8           # f32 sublane granularity
MAX_TILE_ROWS = 2048   # sublane-rows of batch per grid step (2048*128 elems ~ 4 MiB/step)


def linear_sigmoid_kernel(w_ref, b_ref, x_ref, o_ref):
    # w_ref: SMEM [3] f32, b_ref: SMEM [1] f32
    # x_ref: VMEM [3, tile_r, 128]  (feature, batch-row, batch-lane)
    # o_ref: VMEM [tile_r, 128]     (lane-dense output slab -> unmasked stores)
    z = (x_ref[0] * w_ref[0]
         + x_ref[1] * w_ref[1]
         + x_ref[2] * w_ref[2]
         + b_ref[0])
    o_ref[...] = jax.nn.sigmoid(z)   # exp/logistic runs on the EUP, stays off the MXU


def linear_sigmoid_slab(x_fm, weight, bias, *, tile_rows=MAX_TILE_ROWS):
    """Preferred (zero-relayout) entry point.

    x_fm:   [3, R, 128] f32 — feature-major, lane-dense batch, R % 8 == 0.
    weight: [1, 3] f32 (PyTorch [out, in]); bias: [1] f32.
    Returns the lane-dense [R, 128] f32 slab of sigmoid(x @ W.T + b).
    """
    f, rows, lanes = x_fm.shape
    assert f == IN_FEATURES and lanes == LANES and rows % SUBLANES == 0

    tile_r = max(SUBLANES, (min(tile_rows, rows) // SUBLANES) * SUBLANES)
    grid = pl.cdiv(rows, tile_r)   # ragged last block handled by Pallas masking

    w = jnp.asarray(weight, jnp.float32).reshape(IN_FEATURES)
    b = jnp.asarray(bias, jnp.float32).reshape(OUT_FEATURES)

    return pl.pallas_call(
        linear_sigmoid_kernel,
        out_shape=jax.ShapeDtypeStruct((rows, LANES), jnp.float32),
        grid_spec=pltpu.PrefetchScalarGridSpec(
            num_scalar_prefetch=0,
            grid=(grid,),
            in_specs=[
                pl.BlockSpec(memory_space=pltpu.MemorySpace.SMEM),   # w: whole array in SMEM
                pl.BlockSpec(memory_space=pltpu.MemorySpace.SMEM),   # b: whole array in SMEM
                pl.BlockSpec((IN_FEATURES, tile_r, LANES), lambda i: (0, i, 0)),
            ],
            out_specs=pl.BlockSpec((tile_r, LANES), lambda i: (i, 0)),
        ),
        compiler_params=pltpu.CompilerParams(
            dimension_semantics=("parallel",)),
    )(w, b, x_fm)


def linear_sigmoid(x, weight, bias, *, tile_rows=MAX_TILE_ROWS):
    """PyTorch-layout compatibility wrapper: x [N, 3] f32 -> [N, 1] f32.

    NOTE: the transpose/pad relayout here and the final slice add extra HBM
    traffic; performance-critical callers should use `linear_sigmoid_slab`
    with a feature-major [3, R, 128] activation and consume the slab directly.
    """
    n = x.shape[0]
    rows = pl.cdiv(n, LANES)
    rows_pad = ((rows + SUBLANES - 1) // SUBLANES) * SUBLANES   # minimal (8-row) alignment only
    n_pad = rows_pad * LANES

    x_fm = jnp.pad(x.T.astype(jnp.float32), ((0, 0), (0, n_pad - n)))
    x_fm = x_fm.reshape(IN_FEATURES, rows_pad, LANES)

    slab = linear_sigmoid_slab(x_fm, weight, bias, tile_rows=tile_rows)
    return slab.reshape(n_pad)[:n].reshape(n, OUT_FEATURES)


if __name__ == "__main__":
    key = jax.random.PRNGKey(0)
    kx, kw, kb = jax.random.split(key, 3)

    # Deterministic parameters, mimicking nn.Linear's uniform(-1/sqrt(in), 1/sqrt(in)).
    bound = 1.0 / (IN_FEATURES ** 0.5)
    weight = jax.random.uniform(kw, (OUT_FEATURES, IN_FEATURES),
                                minval=-bound, maxval=bound, dtype=jnp.float32)
    bias = jax.random.uniform(kb, (OUT_FEATURES,),
                              minval=-bound, maxval=bound, dtype=jnp.float32)

    ok = True

    # 1) PyTorch-layout compatibility path ([N,3] -> [N,1]).
    #    Small tile overrides exercise multi-step grids and the ragged last block.
    for batch, tile_rows in ((8, MAX_TILE_ROWS),     # single tiny block
                             (200, MAX_TILE_ROWS),   # pad-then-slice path (200 % 128 != 0)
                             (3072, 8),              # multi-step grid, divisible
                             (2600, 16)):            # multi-step grid, ragged last block
        x = jax.random.normal(jax.random.fold_in(kx, batch),
                              (batch, IN_FEATURES), dtype=jnp.float32)
        out = linear_sigmoid(x, weight, bias, tile_rows=tile_rows)
        jax.block_until_ready(out)

        ref = jax.nn.sigmoid(x @ weight.T + bias)
        ok &= (out.shape == (batch, OUT_FEATURES))
        ok &= bool(jnp.allclose(out, ref, atol=1e-5, rtol=1e-5))

    # 2) Preferred feature-major slab path ([3, R, 128] -> [R, 128]), no relayout.
    rows = 16
    x_fm = jax.random.normal(jax.random.fold_in(kx, 999),
                             (IN_FEATURES, rows, LANES), dtype=jnp.float32)
    slab = linear_sigmoid_slab(x_fm, weight, bias)
    jax.block_until_ready(slab)

    x_n3 = x_fm.reshape(IN_FEATURES, rows * LANES).T
    ref_slab = jax.nn.sigmoid(x_n3 @ weight.T + bias).reshape(rows, LANES)
    ok &= bool(jnp.allclose(slab, ref_slab, atol=1e-5, rtol=1e-5))

    assert ok
    print("KERNEL_OK")
</pallas_src>

<mosaic_0001>
module attributes {stable_mosaic.version = 11 : i64} {
  func.func @linear_sigmoid_kernel(%arg0: i32, %arg1: memref<3xf32, #tpu.memory_space<smem>>, %arg2: memref<1xf32, #tpu.memory_space<smem>>, %arg3: memref<3x8x128xf32, #tpu.memory_space<vmem>>, %arg4: memref<8x128xf32, #tpu.memory_space<vmem>>) attributes {dimension_semantics = [#tpu.dimension_semantics<parallel>], iteration_bounds = array<i64: 1>, scalar_prefetch = 0 : i64, scratch_operands = 0 : i64, tpu.core_type = #tpu.core_type<tc>, window_params = [{transform_indices = @transform_0, window_bounds = array<i64: 3>}, {transform_indices = @transform_1, window_bounds = array<i64: 1>}, {transform_indices = @transform_2, window_bounds = array<i64: 3, 8, 128>}, {transform_indices = @transform_3, window_bounds = array<i64: 8, 128>}]} {
    %c0 = arith.constant 0 : index
    %c0_0 = arith.constant 0 : index
    %c0_1 = arith.constant 0 : index
    %0 = vector.load %arg3[%c0, %c0_0, %c0_1] : memref<3x8x128xf32, #tpu.memory_space<vmem>>, vector<1x8x128xf32>
    %1 = vector.shape_cast %0 : vector<1x8x128xf32> to vector<8x128xf32>
    %c0_2 = arith.constant 0 : index
    %2 = memref.load %arg1[%c0_2] : memref<3xf32, #tpu.memory_space<smem>>
    %3 = vector.broadcast %2 : f32 to vector<8x128xf32>
    %4 = arith.mulf %1, %3 : vector<8x128xf32>
    %c1 = arith.constant 1 : index
    %c0_3 = arith.constant 0 : index
    %c0_4 = arith.constant 0 : index
    %5 = vector.load %arg3[%c1, %c0_3, %c0_4] : memref<3x8x128xf32, #tpu.memory_space<vmem>>, vector<1x8x128xf32>
    %6 = vector.shape_cast %5 : vector<1x8x128xf32> to vector<8x128xf32>
    %c1_5 = arith.constant 1 : index
    %7 = memref.load %arg1[%c1_5] : memref<3xf32, #tpu.memory_space<smem>>
    %8 = vector.broadcast %7 : f32 to vector<8x128xf32>
    %9 = arith.mulf %6, %8 : vector<8x128xf32>
    %10 = arith.addf %4, %9 : vector<8x128xf32>
    %c2 = arith.constant 2 : index
    %c0_6 = arith.constant 0 : index
    %c0_7 = arith.constant 0 : index
    %11 = vector.load %arg3[%c2, %c0_6, %c0_7] : memref<3x8x128xf32, #tpu.memory_space<vmem>>, vector<1x8x128xf32>
    %12 = vector.shape_cast %11 : vector<1x8x128xf32> to vector<8x128xf32>
    %c2_8 = arith.constant 2 : index
    %13 = memref.load %arg1[%c2_8] : memref<3xf32, #tpu.memory_space<smem>>
    %14 = vector.broadcast %13 : f32 to vector<8x128xf32>
    %15 = arith.mulf %12, %14 : vector<8x128xf32>
    %16 = arith.addf %10, %15 : vector<8x128xf32>
    %c0_9 = arith.constant 0 : index
    %17 = memref.load %arg2[%c0_9] : memref<1xf32, #tpu.memory_space<smem>>
    %18 = vector.broadcast %17 : f32 to vector<8x128xf32>
    %19 = arith.addf %16, %18 : vector<8x128xf32>
    %20 = arith.negf %19 : vector<8x128xf32>
    %21 = math.exp %20 : vector<8x128xf32>
    %cst = arith.constant 1.000000e+00 : f32
    %22 = vector.broadcast %cst : f32 to vector<8x128xf32>
    %23 = arith.addf %22, %21 : vector<8x128xf32>
    %24 = arith.divf %22, %23 : vector<8x128xf32>
    %c0_10 = arith.constant 0 : index
    %c0_11 = arith.constant 0 : index
    %25 = vector.load %arg4[%c0_10, %c0_11] : memref<8x128xf32, #tpu.memory_space<vmem>>, vector<8x128xf32>
    tpu.vector_store %arg4[%c0_10, %c0_11], %24 {strides = array<i32>} : memref<8x128xf32, #tpu.memory_space<vmem>>, vector<8x128xf32>,
    return
  }
  func.func @transform_0(%arg0: i32) -> i32 {
    %c0_i32 = arith.constant 0 : i32
    %c0_i32_0 = arith.constant 0 : i32
    return %c0_i32 : i32
  }
  func.func @transform_1(%arg0: i32) -> i32 {
    %c0_i32 = arith.constant 0 : i32
    %c0_i32_0 = arith.constant 0 : i32
    return %c0_i32 : i32
  }
  func.func @transform_2(%arg0: i32) -> (i32, i32, i32) {
    %c0_i32 = arith.constant 0 : i32
    %c0_i32_0 = arith.constant 0 : i32
    %c0_i32_1 = arith.constant 0 : i32
    return %c0_i32, %arg0, %c0_i32_0 : i32, i32, i32
  }
  func.func @transform_3(%arg0: i32) -> (i32, i32) {
    %c0_i32 = arith.constant 0 : i32
    %c0_i32_0 = arith.constant 0 : i32
    return %arg0, %c0_i32 : i32, i32
  }
}

</mosaic_0001>

<llo_original>
// kernel: tpu_custom_call.1
$region0: #{tpu_custom_call.1}
  #allocation0 [shape = 'u32[]', space=smem, size = 0x4, offset = 0x4, fixed_abs, tag = 'smem constant byte address 0x4 - core index']
  #allocation1 [shape = 'u32[72,128]{1,0:T(1,128)}', space=vmem, size = 0x9000, scoped, tag = 'internal scratch']
  #allocation2 [shape = 'f32[1]{0:T(128)S(6)}', space=smem, size = 0x200, scoped, tag = 'scoped memory for tpu_custom_call.1']
  %s0 = inlined_call_operand.vmem [shape: f32[3], index: 0, kind: input, shape index: {}]
  %s1 = inlined_call_operand.<no memory space> [shape: f32[1], index: 1, kind: input, shape index: {}]
  %s2 = inlined_call_operand.hbm [shape: f32[3,8,128], index: 2, kind: input, shape index: {}]
  %s3 = inlined_call_operand.hbm [shape: f32[8,128], index: 3, kind: output, shape index: {}]
  %s4 = sld [smem:[#allocation0]]
  $region30: #{tpu_custom_call.1} parent=0
    _
  %s6 = ssub.s32 1, %s4
  %s7 = scalar_select 0, %s6, %s4
  %8 = sst [smem:[#allocation2]] %s1
  $region1: #{tpu_custom_call.1} parent=0
    #allocation3 [shape = 'u8[512]{0}', space=smem, size = 0x200, scoped, tag = 'input window, operand 0, single buffered']
    #allocation4 [shape = 's32[1]{0}', space=sflag, size = 0x4, scoped, tag = 'scoped memory for tpu_custom_call.1']
    #allocation5 [shape = 's32[1]{0}', space=sflag, size = 0x4, scoped, tag = 'scoped memory for tpu_custom_call.1']
    #allocation6 [shape = 's32[1]{0}', space=sflag, size = 0x4, scoped, tag = 'scoped memory for tpu_custom_call.1']
    #allocation7 [shape = 'u8[12288]{0}', space=vmem, size = 0x3000, scoped, tag = 'input window, operand 2, single buffered']
    #allocation8 [shape = 'u8[4096]{0}', space=vmem, size = 0x1000, scoped, tag = 'output window, operand 0, single buffered']
    %9 = vsyncpa [#allocation6], 0
    %10 = vsyncpa [#allocation4], 0
    %11 = vsyncpa [#allocation5], 0
    // Predicated region
    $region2: #{tpu_custom_call.1} parent=1 // pred_check
      _
    $region3: #{tpu_custom_call.1} parent=1 // pred_check_branch
      %13 = sbr.rel (0) target = $region5
    $region4: #{tpu_custom_call.1} parent=1 // pred_region
      %15 = vsyncadd [#allocation6], 0
      %s17 = sshll.u32 %s0, 4
      %s18 = int_to_ptr.vmem [resolvable:$true] %s17
      %20 = dma.vmem_to_smem %s18, 16, [#allocation3], [#allocation6]
    $region5: #{tpu_custom_call.1} parent=1 // pred_fallthru
      _
    // Predicated region
    $region6: #{tpu_custom_call.1} parent=1 // pred_check
      _
    $region7: #{tpu_custom_call.1} parent=1 // pred_check_branch
      %22 = sbr.rel (0) target = $region9
    $region8: #{tpu_custom_call.1} parent=1 // pred_region
      _
    $region9: #{tpu_custom_call.1} parent=1 // pred_fallthru
      _
    // Predicated region
    $region10: #{tpu_custom_call.1} parent=1 // pred_check
      _
    $region11: #{tpu_custom_call.1} parent=1 // pred_check_branch
      %24 = sbr.rel (0) target = $region13
    $region12: #{tpu_custom_call.1} parent=1 // pred_region
      %26 = vsyncadd [#allocation4], 0
      %s27 = sshll.u32 %s2, 4
      %s28 = int_to_ptr.hbm [resolvable:$true] %s27
      %s29 = sshll.u32 [#allocation7], 4
      %s30 = int_to_ptr.vmem [resolvable:$true] %s29
      %35 = dma.hbm_to_vmem [thread:$0]  %s28, 384, %s30, [#allocation4], 128, 128, 8
    $region13: #{tpu_custom_call.1} parent=1 // pred_fallthru
      _
    // Predicated region
    $region14: #{tpu_custom_call.1} parent=1 // pred_check
      _
    $region15: #{tpu_custom_call.1} parent=1 // pred_check_branch
      %37 = sbr.rel (0) target = $region17
    $region16: #{tpu_custom_call.1} parent=1 // pred_region
      %39 = dma.done [#allocation6], 16
    $region17: #{tpu_custom_call.1} parent=1 // pred_fallthru
      _
    // Predicated region
    $region18: #{tpu_custom_call.1} parent=1 // pred_check
      _
    $region19: #{tpu_custom_call.1} parent=1 // pred_check_branch
      %41 = sbr.rel (0) target = $region21
    $region20: #{tpu_custom_call.1} parent=1 // pred_region
      %43 = dma.done [#allocation4], 384
    $region21: #{tpu_custom_call.1} parent=1 // pred_fallthru
      _
    %44 = sfence
    %v45 = vld [vmem:[#allocation7] sm:$0xff]
    %s46 = sld [smem:[#allocation3]]
    %v47 = vstv %s46
    %v48 = vmul.f32 %v45, %v47
    %s49 = scalar_lea.vmem [#allocation7], 8
    %v50 = vld [vmem:[%s49] sm:$0xff]
    %s51 = sld [smem:[#allocation3 + $0x1]]
    %v52 = vstv %s51
    %v53 = vmul.f32 %v50, %v52
    %v54 = vadd.f32 %v48, %v53
    %s55 = scalar_lea.vmem [#allocation7], 16
    %v56 = vld [vmem:[%s55] sm:$0xff]
    %s57 = sld [smem:[#allocation3 + $0x2]]
    %v58 = vstv %s57
    %v59 = vmul.f32 %v56, %v58
    %v60 = vadd.f32 %v54, %v59
    %s61 = sld [smem:[#allocation2]]
    %v62 = vstv %s61
    %v63 = vadd.f32 %v60, %v62
    %v64 = vxor.u32 %v63, 2147483648
    %v65 = vmul.f32 %v64, 1.442695
    %v66 = vpow.pop %v65
    %v67 = vadd.f32 %v66, 1.0
    %v68 = vrcp.pop %v67
    %v69 = vmul.f32 %v67, %v68
    %v70 = vsub.f32 1.0, %v69
    %v71 = vmul.f32 %v68, %v70
    %v72 = vadd.f32 %v68, %v71
    %vm73 = vweird.f32 %v67
    %vm74 = vweird.f32 %v68
    %vm75 = vmor %vm73, %vm74
    %v76 = vsel %vm75, %v68, %v72
    %v77 = vand.u32 2147483647, %v67
    %vm78 = vcmp.eq.f32.partialorder %v77, 8.507059e+37
    %v79 = vand.u32 %v67, 2147483648
    %v80 = vor.u32 1.1754944e-38, %v79
    %v81 = vsel %vm78, %v80, %v76
    %v82 = vmul.f32 1.0, %v81
    %83 = vst [vmem:[#allocation8] sm:$0xff] %v82
    // Predicated region
    $region22: #{tpu_custom_call.1} parent=1 // pred_check
      _
    $region23: #{tpu_custom_call.1} parent=1 // pred_check_branch
      %85 = sbr.rel (0) target = $region25
    $region24: #{tpu_custom_call.1} parent=1 // pred_region
      %87 = vsyncadd [#allocation5], 0
      %s89 = sshll.u32 [#allocation8], 4
      %s90 = int_to_ptr.vmem [resolvable:$true] %s89
      %s91 = sshll.u32 %s3, 4
      %s92 = int_to_ptr.hbm [resolvable:$true] %s91
      %94 = dma.vmem_to_hbm [thread:$0]  %s90, 128, %s92, [#allocation5]
    $region25: #{tpu_custom_call.1} parent=1 // pred_fallthru
      _
    // Predicated region
    $region26: #{tpu_custom_call.1} parent=1 // pred_check
      _
    $region27: #{tpu_custom_call.1} parent=1 // pred_check_branch
      %96 = sbr.rel (0) target = $region29
    $region28: #{tpu_custom_call.1} parent=1 // pred_region
      %98 = dma.done [#allocation5], 128
    $region29: #{tpu_custom_call.1} parent=1 // pred_fallthru
      _
    %99 = vsyncpa [#allocation4], 1
    %100 = vsyncpa [#allocation5], 1
    %101 = vsyncpa [#allocation6], 1

</llo_original>
